<compile_context>
chip_gen: v6e
topology: v6e:2x2x1
jax: 0.10.0
libtpu: 0.0.40
codegen_flags: <defaults>
</compile_context>

<pallas_src>
import jax
import jax.numpy as jnp
from jax.experimental import pallas as pl
from jax.experimental.pallas import tpu as pltpu


def _round_up(x, m):
    return (x + m - 1) // m * m


def _vmem_usable_bytes():
    cap = 64 << 20
    try:
        info_fn = getattr(pltpu, "get_tpu_info", None)
        if info_fn is not None:
            cap = int(getattr(info_fn(), "vmem_capacity_bytes", cap))
    except Exception:
        cap = 64 << 20
    # Leave headroom: ~96 MiB usable on v5e/v6e (128 MiB), ~48 MiB on v7x (64 MiB).
    return max(16 << 20, min(int(cap * 0.75), cap - (8 << 20)))


# ---------------------------------------------------------------------------
# Stage 1: core-tensor contraction  z = sum_k r[:,k] * (x @ W[k])
# grid = (batch tiles, d2 chunks); W2 chunk streamed, z accumulated in VMEM.
# ---------------------------------------------------------------------------
def contraction_kernel(e1_ref, rk_ref, w2_ref, z_ref, acc_ref):
    c = pl.program_id(1)

    @pl.when(c == 0)
    def _():
        acc_ref[...] = jnp.zeros_like(acc_ref)

    # (tb, d1p) @ (d1p, KC*d1p) -> (tb, KC*d1p) on the MXU, f32 accumulation.
    y = jnp.dot(e1_ref[...], w2_ref[...], preferred_element_type=jnp.float32)
    tb, d1p = acc_ref.shape
    kc = rk_ref.shape[-1]
    y3 = y.reshape(tb, kc, d1p)
    acc_ref[...] += jnp.sum(y3 * rk_ref[...][:, :, None], axis=1)

    @pl.when(c == pl.num_programs(1) - 1)
    def _():
        z_ref[...] = acc_ref[...]


# ---------------------------------------------------------------------------
# Stage 2: scoring  pred = sigmoid(z @ E^T + logit_bias)
# grid = (entity tiles OUTER, batch tiles INNER): each E^T tile read once.
# ---------------------------------------------------------------------------
def scoring_kernel(z_ref, et_ref, lb_ref, out_ref):
    logits = jnp.dot(z_ref[...], et_ref[...], preferred_element_type=jnp.float32)
    out_ref[...] = jax.nn.sigmoid(logits + lb_ref[...]).astype(out_ref.dtype)


# ---------------------------------------------------------------------------
# One-time weight preprocessing (hoisted out of the per-step path).
# ---------------------------------------------------------------------------
def prepare_tucker_params(E_w, R_w, W, bn0_params, bn1_params, *,
                          compute_dtype=jnp.bfloat16, tn_target=2048,
                          kc_target=32):
    Ne, d1 = E_w.shape
    _, d2 = R_w.shape
    d1p = _round_up(d1, 128)                       # lane/MXU friendly hidden dim

    kc = _round_up(max(8, min(kc_target, _round_up(d2, 8))), 8)  # d2 chunk width
    d2p = _round_up(d2, kc)
    nkc = d2p // kc

    tn = min(_round_up(tn_target, 128), _round_up(Ne, 128))      # entity tile
    nep = _round_up(Ne, tn)

    def bn_affine(p):
        gamma, beta, mean, var, eps = p
        scale = (gamma / jnp.sqrt(var + eps)).astype(jnp.float32)
        bias = (beta - mean * scale).astype(jnp.float32)
        return scale, bias

    s0, b0 = bn_affine(bn0_params)                 # (d1,)
    s1, b1 = bn_affine(bn1_params)                 # (d1,)

    E_f32 = E_w.astype(jnp.float32)

    # bn0 folded into the e1-gather table (one-time).
    E_in = jnp.pad(E_f32 * s0[None, :] + b0[None, :],
                   ((0, 0), (0, d1p - d1))).astype(compute_dtype)      # (Ne, d1p)

    # Relation table, padded d2 -> d2p (gathered in the wrapper, kept f32).
    R_pad = jnp.pad(R_w.astype(jnp.float32), ((0, 0), (0, d2p - d2)))

    # Core tensor  W2[i, k*d1p + t] = W[k, i, t]  (lane-dense over (k, t);
    # chunk c of width kc occupies contiguous columns [c*kc*d1p, (c+1)*kc*d1p)).
    W2 = jnp.pad(W.astype(jnp.float32),
                 ((0, d2p - d2), (0, d1p - d1), (0, d1p - d1)))
    W2 = W2.transpose(1, 0, 2).reshape(d1p, d2p * d1p).astype(compute_dtype)

    # bn1 folded into the scoring operands:
    #   logits = (z*s1 + b1) @ E^T = z @ (s1[:,None] * E^T) + (E @ b1)
    E_T = jnp.pad((E_f32 * s1[None, :]).T,
                  ((0, d1p - d1), (0, nep - Ne))).astype(compute_dtype)  # (d1p, nep)
    lb = jnp.pad(E_f32 @ b1, (0, nep - Ne)).reshape(1, nep)              # (1, nep) f32

    f32 = jnp.dtype(compute_dtype) == jnp.dtype(jnp.float32)
    out_dtype = jnp.float32 if f32 else jnp.bfloat16   # bf16 halves output HBM writes

    return dict(E_in=E_in, R_pad=R_pad, W2=W2, E_T=E_T, lb=lb,
                Ne=Ne, d1p=d1p, d2p=d2p, kc=kc, nkc=nkc, tn=tn, nep=nep,
                compute_dtype=compute_dtype, out_dtype=out_dtype)


# ---------------------------------------------------------------------------
# Forward wrapper: gathers + padding + the two tiled pallas_calls.
# ---------------------------------------------------------------------------
def tucker_forward(e1_idx, r_idx, params):
    E_in, R_pad, W2 = params["E_in"], params["R_pad"], params["W2"]
    E_T, lb = params["E_T"], params["lb"]
    Ne, d1p = params["Ne"], params["d1p"]
    kc, nkc, tn, nep = params["kc"], params["nkc"], params["tn"], params["nep"]
    cdt, odt = params["compute_dtype"], params["out_dtype"]

    B = e1_idx.shape[0]
    if B >= 512:
        tb = 256                      # fill the 256-wide MXU rows on v6e/v7x
    elif B >= 128:
        tb = 128
    else:
        tb = _round_up(B, 8)
    bp = _round_up(B, tb)

    # Embedding gathers + padding (cheap, left to XLA outside the kernels).
    e1 = jnp.pad(jnp.take(E_in, e1_idx, axis=0), ((0, bp - B), (0, 0)))    # (bp, d1p)
    r = jnp.pad(jnp.take(R_pad, r_idx, axis=0), ((0, bp - B), (0, 0)))     # (bp, d2p)
    r_k = r.reshape(bp, nkc, kc).transpose(1, 0, 2)                        # (nkc, bp, kc)

    it = jnp.dtype(cdt).itemsize
    usable = _vmem_usable_bytes()

    # ---- Stage 1: contraction --------------------------------------------
    con_bytes = (2 * d1p * kc * d1p * it     # streamed W2 chunk (double-buffered)
                 + 2 * tb * d1p * it         # e1 tile
                 + 2 * tb * kc * 4           # r chunk
                 + 2 * tb * d1p * 4          # z output tile
                 + tb * d1p * 4              # f32 accumulator scratch
                 + 3 * tb * kc * d1p * 4)    # y / y3 / broadcast temporaries
    con_vmem = int(min(usable, max(con_bytes * 3 // 2, 8 << 20)))

    z = pl.pallas_call(
        contraction_kernel,
        out_shape=jax.ShapeDtypeStruct((bp, d1p), jnp.float32),
        grid_spec=pltpu.PrefetchScalarGridSpec(
            num_scalar_prefetch=0,
            grid=(bp // tb, nkc),
            in_specs=[
                pl.BlockSpec((tb, d1p), lambda i, c: (i, 0)),             # e1
                pl.BlockSpec((None, tb, kc), lambda i, c: (c, i, 0)),     # r chunk
                pl.BlockSpec((d1p, kc * d1p), lambda i, c: (0, c)),       # W2 chunk
            ],
            out_specs=pl.BlockSpec((tb, d1p), lambda i, c: (i, 0)),
            scratch_shapes=[pltpu.VMEM((tb, d1p), jnp.float32)],
        ),
        compiler_params=pltpu.CompilerParams(
            dimension_semantics=("parallel", "arbitrary"),
            vmem_limit_bytes=con_vmem),
    )(e1, r_k, W2)

    z = z.astype(cdt)

    # ---- Stage 2: scoring ---------------------------------------------------
    o_it = jnp.dtype(odt).itemsize
    sc_bytes = (2 * d1p * tn * it            # E^T tile (double-buffered)
                + 2 * tb * d1p * it          # z tile
                + 2 * tn * 4                 # logit-bias tile
                + 2 * tb * tn * o_it         # output tile
                + 2 * tb * tn * 4)           # f32 logits temporary
    sc_vmem = int(min(usable, max(sc_bytes * 3 // 2, 8 << 20)))

    out = pl.pallas_call(
        scoring_kernel,
        out_shape=jax.ShapeDtypeStruct((bp, nep), odt),
        grid_spec=pltpu.PrefetchScalarGridSpec(
            num_scalar_prefetch=0,
            grid=(nep // tn, bp // tb),      # entity axis OUTER -> E^T read once
            in_specs=[
                pl.BlockSpec((tb, d1p), lambda j, i: (i, 0)),             # z
                pl.BlockSpec((d1p, tn), lambda j, i: (0, j)),             # E^T tile
                pl.BlockSpec((1, tn), lambda j, i: (0, j)),               # logit bias
            ],
            out_specs=pl.BlockSpec((tb, tn), lambda j, i: (i, j)),
        ),
        compiler_params=pltpu.CompilerParams(
            dimension_semantics=("parallel", "parallel"),
            vmem_limit_bytes=sc_vmem),
    )(z, E_T, lb)

    return out[:B, :Ne]


# ---------------------------------------------------------------------------
# Pure-JAX reference matching the PyTorch forward (eval mode).
# ---------------------------------------------------------------------------
def tucker_reference(e1_idx, r_idx, E_w, R_w, W, bn0_params, bn1_params):
    d1 = E_w.shape[1]
    d2 = R_w.shape[1]

    def bn(x, p):
        gamma, beta, mean, var, eps = p
        return (x - mean) / jnp.sqrt(var + eps) * gamma + beta

    e1 = E_w[e1_idx]
    x = bn(e1, bn0_params)
    r = R_w[r_idx]
    W_mat = (r @ W.reshape(d2, d1 * d1)).reshape(-1, d1, d1)
    x = jnp.einsum('bi,bij->bj', x, W_mat)
    x = bn(x, bn1_params)
    return jax.nn.sigmoid(x @ E_w.T)


if __name__ == "__main__":
    # Small, module-consistent shapes; Ne and d2 chosen so the entity axis has
    # >1 tile and the contraction runs >1 d2-chunk.
    num_entities, num_relations = 300, 16
    d1, d2 = 32, 16
    B = 8

    key = jax.random.PRNGKey(0)
    k_e, k_r, k_w, k_g0, k_b0, k_g1, k_b1, k_i1, k_i2 = jax.random.split(key, 9)

    E_w = jax.random.normal(k_e, (num_entities, d1), jnp.float32) \
        * (2.0 / (num_entities + d1)) ** 0.5
    R_w = jax.random.normal(k_r, (num_relations, d2), jnp.float32) \
        * (2.0 / (num_relations + d2)) ** 0.5
    W = jax.random.uniform(k_w, (d2, d1, d1), jnp.float32, -1.0, 1.0)

    eps = 1e-5
    bn0_params = (1.0 + 0.1 * jax.random.normal(k_g0, (d1,), jnp.float32),
                  0.1 * jax.random.normal(k_b0, (d1,), jnp.float32),
                  jnp.zeros((d1,), jnp.float32),
                  jnp.ones((d1,), jnp.float32),
                  eps)
    bn1_params = (1.0 + 0.1 * jax.random.normal(k_g1, (d1,), jnp.float32),
                  0.1 * jax.random.normal(k_b1, (d1,), jnp.float32),
                  jnp.zeros((d1,), jnp.float32),
                  jnp.ones((d1,), jnp.float32),
                  eps)

    e1_idx = jax.random.randint(k_i1, (B,), 0, num_entities, jnp.int32)
    r_idx = jax.random.randint(k_i2, (B,), 0, num_relations, jnp.int32)

    ref = tucker_reference(e1_idx, r_idx, E_w, R_w, W, bn0_params, bn1_params)

    # 1) f32 compute path: exact-math check of the two-kernel structure/tiling.
    params_f32 = prepare_tucker_params(E_w, R_w, W, bn0_params, bn1_params,
                                       compute_dtype=jnp.float32,
                                       tn_target=128, kc_target=8)
    pred_f32 = jax.block_until_ready(tucker_forward(e1_idx, r_idx, params_f32))
    assert pred_f32.shape == (B, num_entities)
    assert jnp.allclose(pred_f32, ref, atol=5e-5, rtol=5e-5)

    # 2) bf16 compute path (production setting): looser tolerance, bf16 output.
    params_bf16 = prepare_tucker_params(E_w, R_w, W, bn0_params, bn1_params,
                                        compute_dtype=jnp.bfloat16,
                                        tn_target=128, kc_target=8)
    pred_bf16 = jax.block_until_ready(tucker_forward(e1_idx, r_idx, params_bf16))
    assert pred_bf16.shape == (B, num_entities)
    assert jnp.allclose(pred_bf16.astype(jnp.float32), ref, atol=3e-2)

    print("KERNEL_OK")
</pallas_src>

<mosaic_0001>
module attributes {stable_mosaic.version = 11 : i64} {
  func.func @contraction_kernel(%arg0: i32, %arg1: i32, %arg2: memref<8x128xf32, #tpu.memory_space<vmem>>, %arg3: memref<1x8x8xf32, #tpu.memory_space<vmem>>, %arg4: memref<128x1024xf32, #tpu.memory_space<vmem>>, %arg5: memref<8x128xf32, #tpu.memory_space<vmem>>, %arg6: memref<8x128xf32, #tpu.memory_space<vmem>>) attributes {dimension_semantics = [#tpu.dimension_semantics<parallel>, #tpu.dimension_semantics<arbitrary>], iteration_bounds = array<i64: 1, 2>, scalar_prefetch = 0 : i64, scratch_operands = 1 : i64, tpu.core_type = #tpu.core_type<tc>, window_params = [{transform_indices = @transform_0, window_bounds = array<i64: 8, 128>}, {transform_indices = @transform_1, window_bounds = array<i64: 1, 8, 8>}, {transform_indices = @transform_2, window_bounds = array<i64: 128, 1024>}, {transform_indices = @transform_3, window_bounds = array<i64: 8, 128>}]} {
    %c0_i32 = arith.constant 0 : i32
    %0 = arith.cmpi eq, %arg1, %c0_i32 : i32
    %1 = arith.extui %0 : i1 to i32
    %c0_i32_0 = arith.constant 0 : i32
    %2 = arith.cmpi ne, %1, %c0_i32_0 : i32
    scf.if %2 {
      %cst_13 = arith.constant 0.000000e+00 : f32
      %19 = vector.broadcast %cst_13 : f32 to vector<8x128xf32>
      %c0_14 = arith.constant 0 : index
      %c0_15 = arith.constant 0 : index
      %20 = vector.load %arg6[%c0_14, %c0_15] : memref<8x128xf32, #tpu.memory_space<vmem>>, vector<8x128xf32>
      tpu.vector_store %arg6[%c0_14, %c0_15], %19 {strides = array<i32>} : memref<8x128xf32, #tpu.memory_space<vmem>>, vector<8x128xf32>,
    } else {
    }
    %c0 = arith.constant 0 : index
    %c0_1 = arith.constant 0 : index
    %3 = vector.load %arg2[%c0, %c0_1] : memref<8x128xf32, #tpu.memory_space<vmem>>, vector<8x128xf32>
    %c0_2 = arith.constant 0 : index
    %c0_3 = arith.constant 0 : index
    %4 = vector.load %arg4[%c0_2, %c0_3] : memref<128x1024xf32, #tpu.memory_space<vmem>>, vector<128x1024xf32>
    %cst = arith.constant dense<0.000000e+00> : vector<8x1024xf32>
    %5 = tpu.matmul %3, %4, %cst {dimension_numbers = #tpu.dot_dimension_numbers<[1], [0], [0], [1], [0, 0, 1, 1], [], []>} : vector<8x128xf32>, vector<128x1024xf32>, vector<8x1024xf32> -> vector<8x1024xf32>
    %6 = vector.shape_cast %5 : vector<8x1024xf32> to vector<8x8x128xf32>
    %c0_4 = arith.constant 0 : index
    %c0_5 = arith.constant 0 : index
    %7 = vector.load %arg6[%c0_4, %c0_5] : memref<8x128xf32, #tpu.memory_space<vmem>>, vector<8x128xf32>
    %c0_6 = arith.constant 0 : index
    %c0_7 = arith.constant 0 : index
    %c0_8 = arith.constant 0 : index
    %8 = vector.load %arg3[%c0_6, %c0_7, %c0_8] : memref<1x8x8xf32, #tpu.memory_space<vmem>>, vector<1x8x8xf32>
    %9 = vector.shape_cast %8 : vector<1x8x8xf32> to vector<8x8xf32>
    %10 = vector.shape_cast %9 : vector<8x8xf32> to vector<8x8x1xf32>
    %11 = vector.broadcast %10 : vector<8x8x1xf32> to vector<8x8x128xf32>
    %12 = arith.mulf %6, %11 : vector<8x8x128xf32>
    %cst_9 = arith.constant dense<0.000000e+00> : vector<8x128xf32>
    %13 = vector.multi_reduction <add>, %12, %cst_9 [1] : vector<8x8x128xf32> to vector<8x128xf32>
    %14 = arith.addf %7, %13 : vector<8x128xf32>
    %c0_10 = arith.constant 0 : index
    %c0_11 = arith.constant 0 : index
    %15 = vector.load %arg6[%c0_10, %c0_11] : memref<8x128xf32, #tpu.memory_space<vmem>>, vector<8x128xf32>
    tpu.vector_store %arg6[%c0_10, %c0_11], %14 {strides = array<i32>} : memref<8x128xf32, #tpu.memory_space<vmem>>, vector<8x128xf32>,
    %c1_i32 = arith.constant 1 : i32
    %16 = arith.cmpi eq, %arg1, %c1_i32 : i32
    %17 = arith.extui %16 : i1 to i32
    %c0_i32_12 = arith.constant 0 : i32
    %18 = arith.cmpi ne, %17, %c0_i32_12 : i32
    scf.if %18 {
      %c0_13 = arith.constant 0 : index
      %c0_14 = arith.constant 0 : index
      %19 = vector.load %arg6[%c0_13, %c0_14] : memref<8x128xf32, #tpu.memory_space<vmem>>, vector<8x128xf32>
      %c0_15 = arith.constant 0 : index
      %c0_16 = arith.constant 0 : index
      %20 = vector.load %arg5[%c0_15, %c0_16] : memref<8x128xf32, #tpu.memory_space<vmem>>, vector<8x128xf32>
      tpu.vector_store %arg5[%c0_15, %c0_16], %19 {strides = array<i32>} : memref<8x128xf32, #tpu.memory_space<vmem>>, vector<8x128xf32>,
    } else {
    }
    return
  }
  func.func @transform_0(%arg0: i32, %arg1: i32) -> (i32, i32) {
    %c0_i32 = arith.constant 0 : i32
    %c0_i32_0 = arith.constant 0 : i32
    return %arg0, %c0_i32 : i32, i32
  }
  func.func @transform_1(%arg0: i32, %arg1: i32) -> (i32, i32, i32) {
    %c0_i32 = arith.constant 0 : i32
    %c0_i32_0 = arith.constant 0 : i32
    return %arg1, %arg0, %c0_i32 : i32, i32, i32
  }
  func.func @transform_2(%arg0: i32, %arg1: i32) -> (i32, i32) {
    %c0_i32 = arith.constant 0 : i32
    %c0_i32_0 = arith.constant 0 : i32
    return %c0_i32, %arg1 : i32, i32
  }
  func.func @transform_3(%arg0: i32, %arg1: i32) -> (i32, i32) {
    %c0_i32 = arith.constant 0 : i32
    %c0_i32_0 = arith.constant 0 : i32
    return %arg0, %c0_i32 : i32, i32
  }
}

</mosaic_0001>

<llo_original>
// kernel: tpu_custom_call.1
$region0: #{tpu_custom_call.1}
  #allocation0 [shape = 'u32[]', space=smem, size = 0x4, offset = 0x4, fixed_abs, tag = 'smem constant byte address 0x4 - core index']
  #allocation1 [shape = 'u32[144,128]{1,0:T(1,128)}', space=vmem, size = 0x12000, scoped, tag = 'internal scratch']
  #allocation2 [shape = 'f32[8,128]{1,0:T(8,128)}', space=vmem, size = 0x1000, scoped, tag = 'scratch operand']
  %s0 = inlined_call_operand.hbm [shape: f32[8,128], index: 0, kind: input, shape index: {}]
  %s1 = inlined_call_operand.hbm [shape: f32[2,8,8], index: 1, kind: input, shape index: {}]
  %s2 = inlined_call_operand.hbm [shape: f32[128,2048], index: 2, kind: input, shape index: {}]
  %s3 = inlined_call_operand.hbm [shape: f32[8,128], index: 3, kind: output, shape index: {}]
  %s4 = sld [smem:[#allocation0]]
  $region65: #{tpu_custom_call.1} parent=0
    _
  %s6 = ssub.s32 1, %s4
  %s7 = scalar_select 0, %s6, %s4
  $region1: #{tpu_custom_call.1} parent=0
    #allocation3 [shape = 'u8[4096]{0}', space=vmem, size = 0x1000, scoped, tag = 'input window, operand 0, single buffered']
    #allocation4 [shape = 's32[2]{0}', space=sflag, size = 0x8, scoped, tag = 'scoped memory for tpu_custom_call.1']
    #allocation5 [shape = 's32[2]{0}', space=sflag, size = 0x8, scoped, tag = 'scoped memory for tpu_custom_call.1']
    #allocation6 [shape = 'u8[8192]{0}', space=vmem, size = 0x2000, scoped, tag = 'input window, operand 1']
    #allocation7 [shape = 's32[2]{0}', space=sflag, size = 0x8, scoped, tag = 'scoped memory for tpu_custom_call.1']
    #allocation8 [shape = 'u8[1048576]{0}', space=vmem, size = 0x100000, scoped, tag = 'input window, operand 2']
    #allocation9 [shape = 'u8[4096]{0}', space=vmem, size = 0x1000, scoped, tag = 'output window, operand 0, single buffered']
    %8 = vsyncpa [#allocation4], 0
    %9 = vsyncpa [#allocation7], 0
    %s10 = scalar_lea.sflag [#allocation7], 1
    %11 = vsyncpa %s10, 0
    %12 = vsyncpa [#allocation5], 0
    loop: start=0, step=1, limit=4
    $region2: #{tpu_custom_call.1} parent=1 // loop_pre_header
      _
    $region3: #{tpu_custom_call.1} parent=1 // loop_header
      %s14 = sphi 0, %s18
      %p15 = scmp.ge.s32.totalorder %s14, 4
      %s21 = sphi 0, %s33
      %s22 = sphi 0, %s29
      %s23 = sphi 0, %s21
      %s24 = sphi 0, %s22
      %s25 = sphi 0, %s23
      %s26 = sphi 0, %s24
      %s36 = sphi 0, %s38
      %s39 = sphi 0, %s36
      %s40 = sphi 0, %s39
      %s56 = sphi 0, %s40
      %s64 = sphi 0, %s66
      %s67 = sphi 0, %s64
      %s68 = sphi 0, %s67
      %s84 = sphi 0, %s68
      %s90 = sphi 0, %s92
      %s93 = sphi 0, %s90
      %s94 = sphi 0, %s93
      %s110 = sphi 0, %s94
      %s116 = sphi 0, %s118
      %s119 = sphi 0, %s116
      %s120 = sphi 0, %s119
      %s136 = sphi 0, %s120
    $region4: #{tpu_custom_call.1} parent=1 // loop_header_branch
      %17 = sbr.rel (%p15) target = $region8
    $region5: #{tpu_custom_call.1} parent=1 // loop_body
      %s19 = ssub.s32 %s14, 1
      %s20 = ssub.s32 %s14, 2
      %s27 = sadd.s32 1, %s22
      %p28 = scmp.ge.s32.totalorder %s27, 2
      %s29 = scalar_select %p28, 0, %s27
      %s30 = sadd.s32 1, %s21
      %s31 = scalar_select %p28, %s30, %s21
      %p32 = scmp.ge.s32.totalorder %s31, 1
      %s33 = scalar_select %p32, 0, %s31
      %s34 = ssub.s32 %s21, %s33
      %p35 = scmp.eq.s32.totalorder %s34, 0
      %s37 = sadd.s32 %s36, 1
      %s38 = scalar_select %p35, %s36, %s37
      %p41 = pneg %p35
      %p42 = scmp.eq.s32.totalorder %s14, 1
      %p43 = por %p41, %p42
      %p44 = scmp.ne.s32.totalorder %s36, %s39
      %p45 = scmp.eq.s32.totalorder %s14, 0
      %p46 = por %p44, %p45
      %p47 = scmp.ne.s32.totalorder %s36, %s39
      %p48 = scmp.eq.s32.totalorder %s19, 1
      %p49 = por %p47, %p48
      %p50 = scmp.ne.s32.totalorder %s39, %s40
      %p51 = scmp.eq.s32.totalorder %s19, 0
      %p52 = por %p50, %p51
      %p53 = scmp.ne.s32.totalorder %s39, %s40
      %p54 = scmp.eq.s32.totalorder %s20, 1
      %p55 = por %p53, %p54
      %p57 = scmp.ne.s32.totalorder %s40, %s56
      %p58 = scmp.eq.s32.totalorder %s20, 0
      %p59 = por %p57, %p58
      %s60 = ssub.s32 %s22, %s29
      %s61 = ssub.s32 %s21, %s33
      %s62 = sor.u32 %s60, %s61
      %p63 = scmp.eq.s32.totalorder %s62, 0
      %s65 = sadd.s32 %s64, 1
      %s66 = scalar_select %p63, %s64, %s65
      %p69 = pneg %p63
      %p70 = scmp.eq.s32.totalorder %s14, 1
      %p71 = por %p69, %p70
      %p72 = scmp.ne.s32.totalorder %s64, %s67
      %p73 = scmp.eq.s32.totalorder %s14, 0
      %p74 = por %p72, %p73
      %p75 = scmp.ne.s32.totalorder %s64, %s67
      %p76 = scmp.eq.s32.totalorder %s19, 1
      %p77 = por %p75, %p76
      %p78 = scmp.ne.s32.totalorder %s67, %s68
      %p79 = scmp.eq.s32.totalorder %s19, 0
      %p80 = por %p78, %p79
      %p81 = scmp.ne.s32.totalorder %s67, %s68
      %p82 = scmp.eq.s32.totalorder %s20, 1
      %p83 = por %p81, %p82
      %p85 = scmp.ne.s32.totalorder %s68, %s84
      %p86 = scmp.eq.s32.totalorder %s20, 0
      %p87 = por %p85, %p86
      %s88 = ssub.s32 %s22, %s29
      %p89 = scmp.eq.s32.totalorder %s88, 0
      %s91 = sadd.s32 %s90, 1
      %s92 = scalar_select %p89, %s90, %s91
      %p95 = pneg %p89
      %p96 = scmp.eq.s32.totalorder %s14, 1
      %p97 = por %p95, %p96
      %p98 = scmp.ne.s32.totalorder %s90, %s93
      %p99 = scmp.eq.s32.totalorder %s14, 0
      %p100 = por %p98, %p99
      %p101 = scmp.ne.s32.totalorder %s90, %s93
      %p102 = scmp.eq.s32.totalorder %s19, 1
      %p103 = por %p101, %p102
      %p104 = scmp.ne.s32.totalorder %s93, %s94
      %p105 = scmp.eq.s32.totalorder %s19, 0
      %p106 = por %p104, %p105
      %p107 = scmp.ne.s32.totalorder %s93, %s94
      %p108 = scmp.eq.s32.totalorder %s20, 1
      %p109 = por %p107, %p108
      %p111 = scmp.ne.s32.totalorder %s94, %s110
      %p112 = scmp.eq.s32.totalorder %s20, 0
      %p113 = por %p111, %p112
      %s114 = ssub.s32 %s21, %s33
      %p115 = scmp.eq.s32.totalorder %s114, 0
      %s117 = sadd.s32 %s116, 1
      %s118 = scalar_select %p115, %s116, %s117
      %p121 = pneg %p115
      %p122 = scmp.eq.s32.totalorder %s14, 1
      %p123 = por %p121, %p122
      %p124 = scmp.ne.s32.totalorder %s116, %s119
      %p125 = scmp.eq.s32.totalorder %s14, 0
      %p126 = por %p124, %p125
      %p127 = scmp.ne.s32.totalorder %s116, %s119
      %p128 = scmp.eq.s32.totalorder %s19, 1
      %p129 = por %p127, %p128
      %p130 = scmp.ne.s32.totalorder %s119, %s120
      %p131 = scmp.eq.s32.totalorder %s19, 0
      %p132 = por %p130, %p131
      %p133 = scmp.ne.s32.totalorder %s119, %s120
      %p134 = scmp.eq.s32.totalorder %s20, 1
      %p135 = por %p133, %p134
      %p137 = scmp.ne.s32.totalorder %s120, %s136
      %p138 = scmp.eq.s32.totalorder %s20, 0
      %p139 = por %p137, %p138
      %p140 = scmp.le.s32.totalorder 1, %s14
      %p141 = scmp.lt.s32.totalorder %s14, 3
      %p142 = pnand %p140, %p141
      %p143 = pneg %p142
      // Predicated region
      $region9: #{tpu_custom_call.1} parent=5 // pred_check
        _
      $region10: #{tpu_custom_call.1} parent=5 // pred_check_branch
        %145 = sbr.rel (%p142) target = $region12
      $region11: #{tpu_custom_call.1} parent=5 // pred_region
        %s146 = ssub.s32 %s14, 1
        // Predicated region
        $region13: #{tpu_custom_call.1} parent=11 // pred_check
          %p147 = pneg %p52
        $region14: #{tpu_custom_call.1} parent=11 // pred_check_branch
          %149 = sbr.rel (%p147) target = $region16
        $region15: #{tpu_custom_call.1} parent=11 // pred_region
          %s151 = ssub.s32 128, 128
          %152 = vsyncadd [#allocation4], %s151
          %s153 = smul.addr %s23, 128
          %s154 = scalar_lea.hbm %s0, %s153
          %s156 = sshll.u32 [#allocation3], 4
          %s157 = int_to_ptr.vmem [resolvable:$true] %s156
          %159 = dma.hbm_to_vmem [thread:$0]  %s154, 128, %s157, [#allocation4]
        $region16: #{tpu_custom_call.1} parent=11 // pred_fallthru
          _
      $region12: #{tpu_custom_call.1} parent=5 // pred_fallthru
        _
      %p160 = scmp.lt.s32.totalorder %s14, 2
      // Predicated region
      $region17: #{tpu_custom_call.1} parent=5 // pred_check
        %p161 = pneg %p160
      $region18: #{tpu_custom_call.1} parent=5 // pred_check_branch
        %163 = sbr.rel (%p161) target = $region20
      $region19: #{tpu_custom_call.1} parent=5 // pred_region
        // Predicated region
        $region21: #{tpu_custom_call.1} parent=19 // pred_check
          %p164 = pneg %p74
        $region22: #{tpu_custom_call.1} parent=19 // pred_check_branch
          %166 = sbr.rel (%p164) target = $region24
        $region23: #{tpu_custom_call.1} parent=19 // pred_region
          %s167 = sand.u32 %s14, 1
          %s168 = scalar_lea.sflag [#allocation7], %s167
          %s169 = sand.u32 %s64, 1
          %s170 = smul.addr %s169, 8
          %s171 = scalar_lea.vmem [#allocation6], %s170
          %s173 = ssub.s32 128, 128
          %174 = vsyncadd %s168, %s173
          %s175 = sadd.s32 %s21, %s22
          %s176 = smul.addr %s175, 128
          %s177 = scalar_lea.hbm %s1, %s176
          %s179 = sshll.u32 %s171, 4
          %s180 = int_to_ptr.vmem [resolvable:$true] %s179
          %182 = dma.hbm_to_vmem [thread:$0]  %s177, 128, %s180, %s168
        $region24: #{tpu_custom_call.1} parent=19 // pred_fallthru
          _
        // Predicated region
        $region25: #{tpu_custom_call.1} parent=19 // pred_check
          %p183 = pneg %p100
        $region26: #{tpu_custom_call.1} parent=19 // pred_check_branch
          %185 = sbr.rel (%p183) target = $region28
        $region27: #{tpu_custom_call.1} parent=19 // pred_region
          %s186 = sand.u32 %s14, 1
          %s187 = scalar_lea.sflag [#allocation7], %s186
          %s188 = sand.u32 %s90, 1
          %s189 = smul.addr %s188, 1024
          %s190 = scalar_lea.vmem [#allocation8], %s189
          %s191 = smul.u32 8, %s22
          %s193 = ssub.s32 16384, 16384
          %194 = vsyncadd %s187, %s193
          %s195 = smul.addr %s191, 128
          %s196 = scalar_lea.hbm %s2, %s195
          %s197 = sshll.u32 %s190, 4
          %s198 = int_to_ptr.vmem [resolvable:$true] %s197
          %203 = dma.hbm_to_vmem [thread:$0]  %s196, 16384, %s198, %s187, 2048, 1024, 64
        $region28: #{tpu_custom_call.1} parent=19 // pred_fallthru
          _
      $region20: #{tpu_custom_call.1} parent=5 // pred_fallthru
        _
      %p204 = scmp.le.s32.totalorder 1, %s14
      %p205 = scmp.lt.s32.totalorder %s14, 3
      %p206 = pnand %p204, %p205
      %p207 = pneg %p206
      // Predicated region
      $region29: #{tpu_custom_call.1} parent=5 // pred_check
        _
      $region30: #{tpu_custom_call.1} parent=5 // pred_check_branch
        %209 = sbr.rel (%p206) target = $region32
      $region31: #{tpu_custom_call.1} parent=5 // pred_region
        %s210 = ssub.s32 %s14, 1
        // Predicated region
        $region33: #{tpu_custom_call.1} parent=31 // pred_check
          %p211 = pneg %p52
        $region34: #{tpu_custom_call.1} parent=31 // pred_check_branch
          %213 = sbr.rel (%p211) target = $region36
        $region35: #{tpu_custom_call.1} parent=31 // pred_region
          %214 = dma.done [#allocation4], 128
        $region36: #{tpu_custom_call.1} parent=31 // pred_fallthru
          _
        %s215 = sand.u32 %s19, 1
        %s216 = scalar_lea.sflag [#allocation7], %s215
        %s217 = sand.u32 %s67, 1
        %s218 = smul.addr %s217, 8
        %s219 = scalar_lea.vmem [#allocation6], %s218
        // Predicated region
        $region37: #{tpu_custom_call.1} parent=31 // pred_check
          %p220 = pneg %p80
        $region38: #{tpu_custom_call.1} parent=31 // pred_check_branch
          %222 = sbr.rel (%p220) target = $region40
        $region39: #{tpu_custom_call.1} parent=31 // pred_region
          %223 = dma.done %s216, 128
        $region40: #{tpu_custom_call.1} parent=31 // pred_fallthru
          _
        %s224 = sand.u32 %s19, 1
        %s225 = scalar_lea.sflag [#allocation7], %s224
        %s226 = sand.u32 %s93, 1
        %s227 = smul.addr %s226, 1024
        %s228 = scalar_lea.vmem [#allocation8], %s227
        // Predicated region
        $region41: #{tpu_custom_call.1} parent=31 // pred_check
          %p229 = pneg %p106
        $region42: #{tpu_custom_call.1} parent=31 // pred_check_branch
          %231 = sbr.rel (%p229) target = $region44
        $region43: #{tpu_custom_call.1} parent=31 // pred_region
          %232 = dma.done %s225, 16384
        $region44: #{tpu_custom_call.1} parent=31 // pred_fallthru
          _
        %p233 = pneg %p52
        %p234 = pneg %p49
        %s235 = sand.u32 %s19, 1
        %s236 = scalar_lea.sflag [#allocation7], %s235
        %s237 = sand.u32 %s67, 1
        %s238 = smul.addr %s237, 8
        %s239 = scalar_lea.vmem [#allocation6], %s238
        %p240 = pneg %p80
        %p241 = pneg %p77
        %s242 = sand.u32 %s19, 1
        %s243 = scalar_lea.sflag [#allocation7], %s242
        %s244 = sand.u32 %s93, 1
        %s245 = smul.addr %s244, 1024
        %s246 = scalar_lea.vmem [#allocation8], %s245
        %p247 = pneg %p106
        %p248 = pneg %p103
        %p249 = pneg %p132
        %p250 = pneg %p129
        %s251 = smul.u32 8, %s24
        %p252 = scmp.eq.s32.totalorder %s24, 0
        // Predicated region
        $region45: #{tpu_custom_call.1} parent=31 // pred_check
          %p253 = pneg %p252
        $region46: #{tpu_custom_call.1} parent=31 // pred_check_branch
          %255 = sbr.rel (%p253) target = $region48
        $region47: #{tpu_custom_call.1} parent=31 // pred_region
          %256 = vst [vmem:[#allocation2] sm:$0xff] 0.0
        $region48: #{tpu_custom_call.1} parent=31 // pred_fallthru
          _
        %v257 = vld [vmem:[#allocation3] sm:$0xff]
        %v258 = vld [vmem:[%s228] sm:$0xff]
        %v259 = vld [vmem:[%s228 + $0x8] sm:$0xff]
        %v260 = vld [vmem:[%s228 + $0x10] sm:$0xff]
        %v261 = vld [vmem:[%s228 + $0x18] sm:$0xff]
        %v262 = vld [vmem:[%s228 + $0x20] sm:$0xff]
        %v263 = vld [vmem:[%s228 + $0x28] sm:$0xff]
        %v264 = vld [vmem:[%s228 + $0x30] sm:$0xff]
        %v265 = vld [vmem:[%s228 + $0x38] sm:$0xff]
        %v266 = vld [vmem:[%s228 + $0x40] sm:$0xff]
        %v267 = vld [vmem:[%s228 + $0x48] sm:$0xff]
        %v268 = vld [vmem:[%s228 + $0x50] sm:$0xff]
        %v269 = vld [vmem:[%s228 + $0x58] sm:$0xff]
        %v270 = vld [vmem:[%s228 + $0x60] sm:$0xff]
        %v271 = vld [vmem:[%s228 + $0x68] sm:$0xff]
        %v272 = vld [vmem:[%s228 + $0x70] sm:$0xff]
        %v273 = vld [vmem:[%s228 + $0x78] sm:$0xff]
        %v274 = vld [vmem:[%s228 + $0x80] sm:$0xff]
        %v275 = vld [vmem:[%s228 + $0x88] sm:$0xff]
        %v276 = vld [vmem:[%s228 + $0x90] sm:$0xff]
        %v277 = vld [vmem:[%s228 + $0x98] sm:$0xff]
        %v278 = vld [vmem:[%s228 + $0xa0] sm:$0xff]
        %v279 = vld [vmem:[%s228 + $0xa8] sm:$0xff]
        %v280 = vld [vmem:[%s228 + $0xb0] sm:$0xff]
        %v281 = vld [vmem:[%s228 + $0xb8] sm:$0xff]
        %v282 = vld [vmem:[%s228 + $0xc0] sm:$0xff]
        %v283 = vld [vmem:[%s228 + $0xc8] sm:$0xff]
        %v284 = vld [vmem:[%s228 + $0xd0] sm:$0xff]
        %v285 = vld [vmem:[%s228 + $0xd8] sm:$0xff]
        %v286 = vld [vmem:[%s228 + $0xe0] sm:$0xff]
        %v287 = vld [vmem:[%s228 + $0xe8] sm:$0xff]
        %v288 = vld [vmem:[%s228 + $0xf0] sm:$0xff]
        %v289 = vld [vmem:[%s228 + $0xf8] sm:$0xff]
        %v290 = vld [vmem:[%s228 + $0x100] sm:$0xff]
        %v291 = vld [vmem:[%s228 + $0x108] sm:$0xff]
        %v292 = vld [vmem:[%s228 + $0x110] sm:$0xff]
        %v293 = vld [vmem:[%s228 + $0x118] sm:$0xff]
        %v294 = vld [vmem:[%s228 + $0x120] sm:$0xff]
        %v295 = vld [vmem:[%s228 + $0x128] sm:$0xff]
        %v296 = vld [vmem:[%s228 + $0x130] sm:$0xff]
        %v297 = vld [vmem:[%s228 + $0x138] sm:$0xff]
        %v298 = vld [vmem:[%s228 + $0x140] sm:$0xff]
        %v299 = vld [vmem:[%s228 + $0x148] sm:$0xff]
        %v300 = vld [vmem:[%s228 + $0x150] sm:$0xff]
        %v301 = vld [vmem:[%s228 + $0x158] sm:$0xff]
        %v302 = vld [vmem:[%s228 + $0x160] sm:$0xff]
        %v303 = vld [vmem:[%s228 + $0x168] sm:$0xff]
        %v304 = vld [vmem:[%s228 + $0x170] sm:$0xff]
        %v305 = vld [vmem:[%s228 + $0x178] sm:$0xff]
        %v306 = vld [vmem:[%s228 + $0x180] sm:$0xff]
        %v307 = vld [vmem:[%s228 + $0x188] sm:$0xff]
        %v308 = vld [vmem:[%s228 + $0x190] sm:$0xff]
        %v309 = vld [vmem:[%s228 + $0x198] sm:$0xff]
        %v310 = vld [vmem:[%s228 + $0x1a0] sm:$0xff]
        %v311 = vld [vmem:[%s228 + $0x1a8] sm:$0xff]
        %v312 = vld [vmem:[%s228 + $0x1b0] sm:$0xff]
        %v313 = vld [vmem:[%s228 + $0x1b8] sm:$0xff]
        %v314 = vld [vmem:[%s228 + $0x1c0] sm:$0xff]
        %v315 = vld [vmem:[%s228 + $0x1c8] sm:$0xff]
        %v316 = vld [vmem:[%s228 + $0x1d0] sm:$0xff]
        %v317 = vld [vmem:[%s228 + $0x1d8] sm:$0xff]
        %v318 = vld [vmem:[%s228 + $0x1e0] sm:$0xff]
        %v319 = vld [vmem:[%s228 + $0x1e8] sm:$0xff]
        %v320 = vld [vmem:[%s228 + $0x1f0] sm:$0xff]
        %v321 = vld [vmem:[%s228 + $0x1f8] sm:$0xff]
        %v322 = vld [vmem:[%s228 + $0x200] sm:$0xff]
        %v323 = vld [vmem:[%s228 + $0x208] sm:$0xff]
        %v324 = vld [vmem:[%s228 + $0x210] sm:$0xff]
        %v325 = vld [vmem:[%s228 + $0x218] sm:$0xff]
        %v326 = vld [vmem:[%s228 + $0x220] sm:$0xff]
        %v327 = vld [vmem:[%s228 + $0x228] sm:$0xff]
        %v328 = vld [vmem:[%s228 + $0x230] sm:$0xff]
        %v329 = vld [vmem:[%s228 + $0x238] sm:$0xff]
        %v330 = vld [vmem:[%s228 + $0x240] sm:$0xff]
        %v331 = vld [vmem:[%s228 + $0x248] sm:$0xff]
        %v332 = vld [vmem:[%s228 + $0x250] sm:$0xff]
        %v333 = vld [vmem:[%s228 + $0x258] sm:$0xff]
        %v334 = vld [vmem:[%s228 + $0x260] sm:$0xff]
        %v335 = vld [vmem:[%s228 + $0x268] sm:$0xff]
        %v336 = vld [vmem:[%s228 + $0x270] sm:$0xff]
        %v337 = vld [vmem:[%s228 + $0x278] sm:$0xff]
        %v338 = vld [vmem:[%s228 + $0x280] sm:$0xff]
        %v339 = vld [vmem:[%s228 + $0x288] sm:$0xff]
        %v340 = vld [vmem:[%s228 + $0x290] sm:$0xff]
        %v341 = vld [vmem:[%s228 + $0x298] sm:$0xff]
        %v342 = vld [vmem:[%s228 + $0x2a0] sm:$0xff]
        %v343 = vld [vmem:[%s228 + $0x2a8] sm:$0xff]
        %v344 = vld [vmem:[%s228 + $0x2b0] sm:$0xff]
        %v345 = vld [vmem:[%s228 + $0x2b8] sm:$0xff]
        %v346 = vld [vmem:[%s228 + $0x2c0] sm:$0xff]
        %v347 = vld [vmem:[%s228 + $0x2c8] sm:$0xff]
        %v348 = vld [vmem:[%s228 + $0x2d0] sm:$0xff]
        %v349 = vld [vmem:[%s228 + $0x2d8] sm:$0xff]
        %v350 = vld [vmem:[%s228 + $0x2e0] sm:$0xff]
        %v351 = vld [vmem:[%s228 + $0x2e8] sm:$0xff]
        %v352 = vld [vmem:[%s228 + $0x2f0] sm:$0xff]
        %v353 = vld [vmem:[%s228 + $0x2f8] sm:$0xff]
        %v354 = vld [vmem:[%s228 + $0x300] sm:$0xff]
        %v355 = vld [vmem:[%s228 + $0x308] sm:$0xff]
        %v356 = vld [vmem:[%s228 + $0x310] sm:$0xff]
        %v357 = vld [vmem:[%s228 + $0x318] sm:$0xff]
        %v358 = vld [vmem:[%s228 + $0x320] sm:$0xff]
        %v359 = vld [vmem:[%s228 + $0x328] sm:$0xff]
        %v360 = vld [vmem:[%s228 + $0x330] sm:$0xff]
        %v361 = vld [vmem:[%s228 + $0x338] sm:$0xff]
        %v362 = vld [vmem:[%s228 + $0x340] sm:$0xff]
        %v363 = vld [vmem:[%s228 + $0x348] sm:$0xff]
        %v364 = vld [vmem:[%s228 + $0x350] sm:$0xff]
        %v365 = vld [vmem:[%s228 + $0x358] sm:$0xff]
        %v366 = vld [vmem:[%s228 + $0x360] sm:$0xff]
        %v367 = vld [vmem:[%s228 + $0x368] sm:$0xff]
        %v368 = vld [vmem:[%s228 + $0x370] sm:$0xff]
        %v369 = vld [vmem:[%s228 + $0x378] sm:$0xff]
        %v370 = vld [vmem:[%s228 + $0x380] sm:$0xff]
        %v371 = vld [vmem:[%s228 + $0x388] sm:$0xff]
        %v372 = vld [vmem:[%s228 + $0x390] sm:$0xff]
        %v373 = vld [vmem:[%s228 + $0x398] sm:$0xff]
        %v374 = vld [vmem:[%s228 + $0x3a0] sm:$0xff]
        %v375 = vld [vmem:[%s228 + $0x3a8] sm:$0xff]
        %v376 = vld [vmem:[%s228 + $0x3b0] sm:$0xff]
        %v377 = vld [vmem:[%s228 + $0x3b8] sm:$0xff]
        %v378 = vld [vmem:[%s228 + $0x3c0] sm:$0xff]
        %v379 = vld [vmem:[%s228 + $0x3c8] sm:$0xff]
        %v380 = vld [vmem:[%s228 + $0x3d0] sm:$0xff]
        %v381 = vld [vmem:[%s228 + $0x3d8] sm:$0xff]
        %v382 = vld [vmem:[%s228 + $0x3e0] sm:$0xff]
        %v383 = vld [vmem:[%s228 + $0x3e8] sm:$0xff]
        %v384 = vld [vmem:[%s228 + $0x3f0] sm:$0xff]
        %v385 = vld [vmem:[%s228 + $0x3f8] sm:$0xff]
        %386 = vmatprep.subr.mxu0 %v379
        %387 = vmatpush1.msra.mxu0 %v378
        %388 = vmatprep.subr.mxu0 %v371
        %389 = vmatpush1.msra.mxu0 %v370
        %390 = vmatprep.subr.mxu0 %v363
        %391 = vmatpush1.msra.mxu0 %v362
        %392 = vmatprep.subr.mxu0 %v355
        %393 = vmatpush1.msra.mxu0 %v354
        %394 = vmatprep.subr.mxu0 %v347
        %395 = vmatpush1.msra.mxu0 %v346
        %396 = vmatprep.subr.mxu0 %v339
        %397 = vmatpush1.msra.mxu0 %v338
        %398 = vmatprep.subr.mxu0 %v331
        %399 = vmatpush1.msra.mxu0 %v330
        %400 = vmatprep.subr.mxu0 %v323
        %401 = vmatpush1.msra.mxu0 %v322
        %402 = vmatprep.subr.mxu0 %v315
        %403 = vmatpush1.msra.mxu0 %v314
        %404 = vmatprep.subr.mxu0 %v307
        %405 = vmatpush1.msra.mxu0 %v306
        %406 = vmatprep.subr.mxu0 %v299
        %407 = vmatpush1.msra.mxu0 %v298
        %408 = vmatprep.subr.mxu0 %v291
        %409 = vmatpush1.msra.mxu0 %v290
        %410 = vmatprep.subr.mxu0 %v283
        %411 = vmatpush1.msra.mxu0 %v282
        %412 = vmatprep.subr.mxu0 %v275
        %413 = vmatpush1.msra.mxu0 %v274
        %414 = vmatprep.subr.mxu0 %v267
        %415 = vmatpush1.msra.mxu0 %v266
        %416 = vmatprep.subr.mxu0 %v259
        %417 = vmatpush1.msra.mxu0 %v258
        %418 = vmatprep.subr.mxu0 0.0
        %419 = vmatpush2.msra.mxu0 0.0
        %420 = vmatprep.subr.mxu0 0.0
        %421 = vmatpush2.msra.mxu0 0.0
        %422 = vmatprep.subr.mxu0 0.0
        %423 = vmatpush2.msra.mxu0 0.0
        %424 = vmatprep.subr.mxu0 0.0
        %425 = vmatpush2.msra.mxu0 0.0
        %426 = vmatprep.subr.mxu0 0.0
        %427 = vmatpush2.msra.mxu0 0.0
        %428 = vmatprep.subr.mxu0 0.0
        %429 = vmatpush2.msra.mxu0 0.0
        %430 = vmatprep.subr.mxu0 0.0
        %431 = vmatpush2.msra.mxu0 0.0
        %432 = vmatprep.subr.mxu0 0.0
        %433 = vmatpush2.msra.mxu0 0.0
        %434 = vmatprep.subr.mxu0 0.0
        %435 = vmatpush2.msra.mxu0 0.0
        %436 = vmatprep.subr.mxu0 0.0
        %437 = vmatpush2.msra.mxu0 0.0
        %438 = vmatprep.subr.mxu0 0.0
        %439 = vmatpush2.msra.mxu0 0.0
        %440 = vmatprep.subr.mxu0 0.0
        %441 = vmatpush2.msra.mxu0 0.0
        %442 = vmatprep.subr.mxu0 0.0
        %443 = vmatpush2.msra.mxu0 0.0
        %444 = vmatprep.subr.mxu0 0.0
        %445 = vmatpush2.msra.mxu0 0.0
        %446 = vmatprep.subr.mxu0 0.0
        %447 = vmatpush2.msra.mxu0 0.0
        %448 = vmatprep.subr.mxu0 0.0
        %449 = vmatpush2.msra.mxu0 0.0
        %450 = vmatprep.mubr.f32.mxu0 0.0
        %451 = vmatmul.mubr.f32.gmra.mxu0 %v257
        %v452 = vpop.f32.mrf.mxu0
        %v453 = vadd.f32 0.0, %v452
        %v454 = vpop.f32.mrf.mxu0
        %v455 = vadd.f32 0.0, %v454
        %456 = vdwg.mxu0
        %457 = vmatprep.subr.mxu0 %v381
        %458 = vmatpush1.msra.mxu0 %v380
        %459 = vmatprep.subr.mxu0 %v373
        %460 = vmatpush1.msra.mxu0 %v372
        %461 = vmatprep.subr.mxu0 %v365
        %462 = vmatpush1.msra.mxu0 %v364
        %463 = vmatprep.subr.mxu0 %v357
        %464 = vmatpush1.msra.mxu0 %v356
        %465 = vmatprep.subr.mxu0 %v349
        %466 = vmatpush1.msra.mxu0 %v348
        %467 = vmatprep.subr.mxu0 %v341
        %468 = vmatpush1.msra.mxu0 %v340
        %469 = vmatprep.subr.mxu0 %v333
        %470 = vmatpush1.msra.mxu0 %v332
        %471 = vmatprep.subr.mxu0 %v325
        %472 = vmatpush1.msra.mxu0 %v324
        %473 = vmatprep.subr.mxu0 %v317
        %474 = vmatpush1.msra.mxu0 %v316
        %475 = vmatprep.subr.mxu0 %v309
        %476 = vmatpush1.msra.mxu0 %v308
        %477 = vmatprep.subr.mxu0 %v301
        %478 = vmatpush1.msra.mxu0 %v300
        %479 = vmatprep.subr.mxu0 %v293
        %480 = vmatpush1.msra.mxu0 %v292
        %481 = vmatprep.subr.mxu0 %v285
        %482 = vmatpush1.msra.mxu0 %v284
        %483 = vmatprep.subr.mxu0 %v277
        %484 = vmatpush1.msra.mxu0 %v276
        %485 = vmatprep.subr.mxu0 %v269
        %486 = vmatpush1.msra.mxu0 %v268
        %487 = vmatprep.subr.mxu0 %v261
        %488 = vmatpush1.msra.mxu0 %v260
        %489 = vmatprep.subr.mxu0 0.0
        %490 = vmatpush2.msra.mxu0 0.0
        %491 = vmatprep.subr.mxu0 0.0
        %492 = vmatpush2.msra.mxu0 0.0
        %493 = vmatprep.subr.mxu0 0.0
        %494 = vmatpush2.msra.mxu0 0.0
        %495 = vmatprep.subr.mxu0 0.0
        %496 = vmatpush2.msra.mxu0 0.0
        %497 = vmatprep.subr.mxu0 0.0
        %498 = vmatpush2.msra.mxu0 0.0
        %499 = vmatprep.subr.mxu0 0.0
        %500 = vmatpush2.msra.mxu0 0.0
        %501 = vmatprep.subr.mxu0 0.0
        %502 = vmatpush2.msra.mxu0 0.0
        %503 = vmatprep.subr.mxu0 0.0
        %504 = vmatpush2.msra.mxu0 0.0
        %505 = vmatprep.subr.mxu0 0.0
        %506 = vmatpush2.msra.mxu0 0.0
        %507 = vmatprep.subr.mxu0 0.0
        %508 = vmatpush2.msra.mxu0 0.0
        %509 = vmatprep.subr.mxu0 0.0
        %510 = vmatpush2.msra.mxu0 0.0
        %511 = vmatprep.subr.mxu0 0.0
        %512 = vmatpush2.msra.mxu0 0.0
        %513 = vmatprep.subr.mxu0 0.0
        %514 = vmatpush2.msra.mxu0 0.0
        %515 = vmatprep.subr.mxu0 0.0
        %516 = vmatpush2.msra.mxu0 0.0
        %517 = vmatprep.subr.mxu0 0.0
        %518 = vmatpush2.msra.mxu0 0.0
        %519 = vmatprep.subr.mxu0 0.0
        %520 = vmatpush2.msra.mxu0 0.0
        %521 = vmatprep.mubr.f32.mxu0 0.0
        %522 = vmatmul.mubr.f32.gmra.mxu0 %v257
        %v523 = vpop.f32.mrf.mxu0
        %v524 = vadd.f32 0.0, %v523
        %v525 = vpop.f32.mrf.mxu0
        %v526 = vadd.f32 0.0, %v525
        %527 = vdwg.mxu0
        %528 = vmatprep.subr.mxu0 %v383
        %529 = vmatpush1.msra.mxu0 %v382
        %530 = vmatprep.subr.mxu0 %v375
        %531 = vmatpush1.msra.mxu0 %v374
        %532 = vmatprep.subr.mxu0 %v367
        %533 = vmatpush1.msra.mxu0 %v366
        %534 = vmatprep.subr.mxu0 %v359
        %535 = vmatpush1.msra.mxu0 %v358
        %536 = vmatprep.subr.mxu0 %v351
        %537 = vmatpush1.msra.mxu0 %v350
        %538 = vmatprep.subr.mxu0 %v343
        %539 = vmatpush1.msra.mxu0 %v342
        %540 = vmatprep.subr.mxu0 %v335
        %541 = vmatpush1.msra.mxu0 %v334
        %542 = vmatprep.subr.mxu0 %v327
        %543 = vmatpush1.msra.mxu0 %v326
        %544 = vmatprep.subr.mxu0 %v319
        %545 = vmatpush1.msra.mxu0 %v318
        %546 = vmatprep.subr.mxu0 %v311
        %547 = vmatpush1.msra.mxu0 %v310
        %548 = vmatprep.subr.mxu0 %v303
        %549 = vmatpush1.msra.mxu0 %v302
        %550 = vmatprep.subr.mxu0 %v295
        %551 = vmatpush1.msra.mxu0 %v294
        %552 = vmatprep.subr.mxu0 %v287
        %553 = vmatpush1.msra.mxu0 %v286
        %554 = vmatprep.subr.mxu0 %v279
        %555 = vmatpush1.msra.mxu0 %v278
        %556 = vmatprep.subr.mxu0 %v271
        %557 = vmatpush1.msra.mxu0 %v270
        %558 = vmatprep.subr.mxu0 %v263
        %559 = vmatpush1.msra.mxu0 %v262
        %560 = vmatprep.subr.mxu0 0.0
        %561 = vmatpush2.msra.mxu0 0.0
        %562 = vmatprep.subr.mxu0 0.0
        %563 = vmatpush2.msra.mxu0 0.0
        %564 = vmatprep.subr.mxu0 0.0
        %565 = vmatpush2.msra.mxu0 0.0
        %566 = vmatprep.subr.mxu0 0.0
        %567 = vmatpush2.msra.mxu0 0.0
        %568 = vmatprep.subr.mxu0 0.0
        %569 = vmatpush2.msra.mxu0 0.0
        %570 = vmatprep.subr.mxu0 0.0
        %571 = vmatpush2.msra.mxu0 0.0
        %572 = vmatprep.subr.mxu0 0.0
        %573 = vmatpush2.msra.mxu0 0.0
        %574 = vmatprep.subr.mxu0 0.0
        %575 = vmatpush2.msra.mxu0 0.0
        %576 = vmatprep.subr.mxu0 0.0
        %577 = vmatpush2.msra.mxu0 0.0
        %578 = vmatprep.subr.mxu0 0.0
        %579 = vmatpush2.msra.mxu0 0.0
        %580 = vmatprep.subr.mxu0 0.0
        %581 = vmatpush2.msra.mxu0 0.0
        %582 = vmatprep.subr.mxu0 0.0
        %583 = vmatpush2.msra.mxu0 0.0
        %584 = vmatprep.subr.mxu0 0.0
        %585 = vmatpush2.msra.mxu0 0.0
        %586 = vmatprep.subr.mxu0 0.0
        %587 = vmatpush2.msra.mxu0 0.0
        %588 = vmatprep.subr.mxu0 0.0
        %589 = vmatpush2.msra.mxu0 0.0
        %590 = vmatprep.subr.mxu0 0.0
        %591 = vmatpush2.msra.mxu0 0.0
        %592 = vmatprep.mubr.f32.mxu0 0.0
        %593 = vmatmul.mubr.f32.gmra.mxu0 %v257
        %v594 = vpop.f32.mrf.mxu0
        %v595 = vadd.f32 0.0, %v594
        %v596 = vpop.f32.mrf.mxu0
        %v597 = vadd.f32 0.0, %v596
        %598 = vdwg.mxu0
        %599 = vmatprep.subr.mxu0 %v385
        %600 = vmatpush1.msra.mxu0 %v384
        %601 = vmatprep.subr.mxu0 %v377
        %602 = vmatpush1.msra.mxu0 %v376
        %603 = vmatprep.subr.mxu0 %v369
        %604 = vmatpush1.msra.mxu0 %v368
        %605 = vmatprep.subr.mxu0 %v361
        %606 = vmatpush1.msra.mxu0 %v360
        %607 = vmatprep.subr.mxu0 %v353
        %608 = vmatpush1.msra.mxu0 %v352
        %609 = vmatprep.subr.mxu0 %v345
        %610 = vmatpush1.msra.mxu0 %v344
        %611 = vmatprep.subr.mxu0 %v337
        %612 = vmatpush1.msra.mxu0 %v336
        %613 = vmatprep.subr.mxu0 %v329
        %614 = vmatpush1.msra.mxu0 %v328
        %615 = vmatprep.subr.mxu0 %v321
        %616 = vmatpush1.msra.mxu0 %v320
        %617 = vmatprep.subr.mxu0 %v313
        %618 = vmatpush1.msra.mxu0 %v312
        %619 = vmatprep.subr.mxu0 %v305
        %620 = vmatpush1.msra.mxu0 %v304
        %621 = vmatprep.subr.mxu0 %v297
        %622 = vmatpush1.msra.mxu0 %v296
        %623 = vmatprep.subr.mxu0 %v289
        %624 = vmatpush1.msra.mxu0 %v288
        %625 = vmatprep.subr.mxu0 %v281
        %626 = vmatpush1.msra.mxu0 %v280
        %627 = vmatprep.subr.mxu0 %v273
        %628 = vmatpush1.msra.mxu0 %v272
        %629 = vmatprep.subr.mxu0 %v265
        %630 = vmatpush1.msra.mxu0 %v264
        %631 = vmatprep.subr.mxu0 0.0
        %632 = vmatpush2.msra.mxu0 0.0
        %633 = vmatprep.subr.mxu0 0.0
        %634 = vmatpush2.msra.mxu0 0.0
        %635 = vmatprep.subr.mxu0 0.0
        %636 = vmatpush2.msra.mxu0 0.0
        %637 = vmatprep.subr.mxu0 0.0
        %638 = vmatpush2.msra.mxu0 0.0
        %639 = vmatprep.subr.mxu0 0.0
        %640 = vmatpush2.msra.mxu0 0.0
        %641 = vmatprep.subr.mxu0 0.0
        %642 = vmatpush2.msra.mxu0 0.0
        %643 = vmatprep.subr.mxu0 0.0
        %644 = vmatpush2.msra.mxu0 0.0
        %645 = vmatprep.subr.mxu0 0.0
        %646 = vmatpush2.msra.mxu0 0.0
        %647 = vmatprep.subr.mxu0 0.0
        %648 = vmatpush2.msra.mxu0 0.0
        %649 = vmatprep.subr.mxu0 0.0
        %650 = vmatpush2.msra.mxu0 0.0
        %651 = vmatprep.subr.mxu0 0.0
        %652 = vmatpush2.msra.mxu0 0.0
        %653 = vmatprep.subr.mxu0 0.0
        %654 = vmatpush2.msra.mxu0 0.0
        %655 = vmatprep.subr.mxu0 0.0
        %656 = vmatpush2.msra.mxu0 0.0
        %657 = vmatprep.subr.mxu0 0.0
        %658 = vmatpush2.msra.mxu0 0.0
        %659 = vmatprep.subr.mxu0 0.0
        %660 = vmatpush2.msra.mxu0 0.0
        %661 = vmatprep.subr.mxu0 0.0
        %662 = vmatpush2.msra.mxu0 0.0
        %663 = vmatprep.mubr.f32.mxu0 0.0
        %664 = vmatmul.mubr.f32.gmra.mxu0 %v257
        %v665 = vpop.f32.mrf.mxu0
        %v666 = vadd.f32 0.0, %v665
        %v667 = vpop.f32.mrf.mxu0
        %v668 = vadd.f32 0.0, %v667
        %669 = vdwg.mxu0
        %v670 = vcombine.low %v453, %v524
        %v671 = vcombine.high %v453, %v524
        %v673 = vunpack.c.l.s4 1983009808
        %v674 = vunpack.c.0.s8 %v673
        %v675 = vlaneseq
        %v676 = vshrl.u32 %v675, 7
        %v677 = vsub.s32 %v674, %v676
        %v678 = vrot.slane %v670, %v677
        %v680 = vunpack.c.l.s4 1983009808
        %v681 = vunpack.c.0.s8 %v680
        %v682 = vlaneseq
        %v683 = vshrl.u32 %v682, 7
        %v684 = vsub.s32 %v681, %v683
        %v685 = vrot.slane %v671, %v684
        %v686 = vcombine.low %v455, %v526
        %v687 = vcombine.high %v455, %v526
        %v689 = vunpack.c.l.s4 1983009808
        %v690 = vunpack.c.0.s8 %v689
        %v691 = vlaneseq
        %v692 = vshrl.u32 %v691, 7
        %v693 = vsub.s32 %v690, %v692
        %v694 = vrot.slane %v686, %v693
        %v696 = vunpack.c.l.s4 1983009808
        %v697 = vunpack.c.0.s8 %v696
        %v698 = vlaneseq
        %v699 = vshrl.u32 %v698, 7
        %v700 = vsub.s32 %v697, %v699
        %v701 = vrot.slane %v687, %v700
        %v702 = vcombine.low %v595, %v666
        %v703 = vcombine.high %v595, %v666
        %v705 = vunpack.c.l.s4 1983009808
        %v706 = vunpack.c.0.s8 %v705
        %v707 = vlaneseq
        %v708 = vshrl.u32 %v707, 7
        %v709 = vsub.s32 %v706, %v708
        %v710 = vrot.slane %v702, %v709
        %v712 = vunpack.c.l.s4 1983009808
        %v713 = vunpack.c.0.s8 %v712
        %v714 = vlaneseq
        %v715 = vshrl.u32 %v714, 7
        %v716 = vsub.s32 %v713, %v715
        %v717 = vrot.slane %v703, %v716
        %v718 = vcombine.low %v597, %v668
        %v719 = vcombine.high %v597, %v668
        %v721 = vunpack.c.l.s4 1983009808
        %v722 = vunpack.c.0.s8 %v721
        %v723 = vlaneseq
        %v724 = vshrl.u32 %v723, 7
        %v725 = vsub.s32 %v722, %v724
        %v726 = vrot.slane %v718, %v725
        %v728 = vunpack.c.l.s4 1983009808
        %v729 = vunpack.c.0.s8 %v728
        %v730 = vlaneseq
        %v731 = vshrl.u32 %v730, 7
        %v732 = vsub.s32 %v729, %v731
        %v733 = vrot.slane %v719, %v732
        %v734 = vcombine.low %v678, %v694
        %v735 = vcombine.high %v678, %v694
        %v737 = vunpack.c.l.s4 1934713408
        %v738 = vunpack.c.0.s8 %v737
        %v739 = vlaneseq
        %v740 = vshrl.u32 %v739, 7
        %v741 = vsub.s32 %v738, %v740
        %v742 = vrot.slane %v734, %v741
        %v744 = vunpack.c.l.s4 1934713408
        %v745 = vunpack.c.0.s8 %v744
        %v746 = vlaneseq
        %v747 = vshrl.u32 %v746, 7
        %v748 = vsub.s32 %v745, %v747
        %v749 = vrot.slane %v735, %v748
        %v750 = vcombine.low %v685, %v701
        %v751 = vcombine.high %v685, %v701
        %v753 = vunpack.c.l.s4 1934713408
        %v754 = vunpack.c.0.s8 %v753
        %v755 = vlaneseq
        %v756 = vshrl.u32 %v755, 7
        %v757 = vsub.s32 %v754, %v756
        %v758 = vrot.slane %v750, %v757
        %v760 = vunpack.c.l.s4 1934713408
        %v761 = vunpack.c.0.s8 %v760
        %v762 = vlaneseq
        %v763 = vshrl.u32 %v762, 7
        %v764 = vsub.s32 %v761, %v763
        %v765 = vrot.slane %v751, %v764
        %v766 = vcombine.low %v710, %v726
        %v767 = vcombine.high %v710, %v726
        %v769 = vunpack.c.l.s4 1934713408
        %v770 = vunpack.c.0.s8 %v769
        %v771 = vlaneseq
        %v772 = vshrl.u32 %v771, 7
        %v773 = vsub.s32 %v770, %v772
        %v774 = vrot.slane %v766, %v773
        %v776 = vunpack.c.l.s4 1934713408
        %v777 = vunpack.c.0.s8 %v776
        %v778 = vlaneseq
        %v779 = vshrl.u32 %v778, 7
        %v780 = vsub.s32 %v777, %v779
        %v781 = vrot.slane %v767, %v780
        %v782 = vcombine.low %v717, %v733
        %v783 = vcombine.high %v717, %v733
        %v785 = vunpack.c.l.s4 1934713408
        %v786 = vunpack.c.0.s8 %v785
        %v787 = vlaneseq
        %v788 = vshrl.u32 %v787, 7
        %v789 = vsub.s32 %v786, %v788
        %v790 = vrot.slane %v782, %v789
        %v792 = vunpack.c.l.s4 1934713408
        %v793 = vunpack.c.0.s8 %v792
        %v794 = vlaneseq
        %v795 = vshrl.u32 %v794, 7
        %v796 = vsub.s32 %v793, %v795
        %v797 = vrot.slane %v783, %v796
        %v798 = vcombine.low %v742, %v774
        %v799 = vcombine.high %v742, %v774
        %v800 = vcombine.low %v749, %v781
        %v801 = vcombine.high %v749, %v781
        %v802 = vcombine.low %v758, %v790
        %v803 = vcombine.high %v758, %v790
        %v804 = vcombine.low %v765, %v797
        %v805 = vcombine.high %v765, %v797
        %v806 = vld [vmem:[#allocation2] sm:$0xff]
        %v807 = vld [vmem:[%s219] sm:$0xff]
        %v808 = vlaneseq
        %v809 = vshrl.u32 %v808, 7
        %v810 = vsub.s32 0, %v809
        %v811 = vrot.slane %v807, %v810
        %813 = vbcast.lane.b32.xlu0 %v811, 256
        %v814 = vpop.permute.xlu0 %813
        %v815 = vlaneseq
        %v816 = vshrl.u32 %v815, 7
        %v817 = vsub.s32 1, %v816
        %v818 = vrot.slane %v807, %v817
        %820 = vbcast.lane.b32.xlu0 %v818, 256
        %v821 = vpop.permute.xlu0 %820
        %v822 = vlaneseq
        %v823 = vshrl.u32 %v822, 7
        %v824 = vsub.s32 2, %v823
        %v825 = vrot.slane %v807, %v824
        %827 = vbcast.lane.b32.xlu0 %v825, 256
        %v828 = vpop.permute.xlu0 %827
        %v829 = vlaneseq
        %v830 = vshrl.u32 %v829, 7
        %v831 = vsub.s32 3, %v830
        %v832 = vrot.slane %v807, %v831
        %834 = vbcast.lane.b32.xlu0 %v832, 256
        %v835 = vpop.permute.xlu0 %834
        %v836 = vlaneseq
        %v837 = vshrl.u32 %v836, 7
        %v838 = vsub.s32 4, %v837
        %v839 = vrot.slane %v807, %v838
        %841 = vbcast.lane.b32.xlu0 %v839, 256
        %v842 = vpop.permute.xlu0 %841
        %v843 = vlaneseq
        %v844 = vshrl.u32 %v843, 7
        %v845 = vsub.s32 5, %v844
        %v846 = vrot.slane %v807, %v845
        %848 = vbcast.lane.b32.xlu0 %v846, 256
        %v849 = vpop.permute.xlu0 %848
        %v850 = vlaneseq
        %v851 = vshrl.u32 %v850, 7
        %v852 = vsub.s32 6, %v851
        %v853 = vrot.slane %v807, %v852
        %855 = vbcast.lane.b32.xlu0 %v853, 256
        %v856 = vpop.permute.xlu0 %855
        %v857 = vlaneseq
        %v858 = vshrl.u32 %v857, 7
        %v859 = vsub.s32 7, %v858
        %v860 = vrot.slane %v807, %v859
        %862 = vbcast.lane.b32.xlu0 %v860, 256
        %v863 = vpop.permute.xlu0 %862
        %v864 = vmul.f32 %v798, %v814
        %v865 = vmul.f32 %v799, %v821
        %v866 = vmul.f32 %v800, %v828
        %v867 = vmul.f32 %v801, %v835
        %v868 = vmul.f32 %v802, %v842
        %v869 = vmul.f32 %v803, %v849
        %v870 = vmul.f32 %v804, %v856
        %v871 = vmul.f32 %v805, %v863
        %v872 = vrot.slane %v864, 4
        %v873 = vadd.f32 %v864, %v872
        %v874 = vrot.slane %v873, 2
        %v875 = vadd.f32 %v873, %v874
        %v876 = vrot.slane %v875, 1
        %v877 = vadd.f32 %v875, %v876
        %v878 = vrot.slane %v865, 4
        %v879 = vadd.f32 %v865, %v878
        %v880 = vrot.slane %v879, 2
        %v881 = vadd.f32 %v879, %v880
        %v882 = vrot.slane %v881, 1
        %v883 = vadd.f32 %v881, %v882
        %v884 = vrot.slane %v866, 4
        %v885 = vadd.f32 %v866, %v884
        %v886 = vrot.slane %v885, 2
        %v887 = vadd.f32 %v885, %v886
        %v888 = vrot.slane %v887, 1
        %v889 = vadd.f32 %v887, %v888
        %v890 = vrot.slane %v867, 4
        %v891 = vadd.f32 %v867, %v890
        %v892 = vrot.slane %v891, 2
        %v893 = vadd.f32 %v891, %v892
        %v894 = vrot.slane %v893, 1
        %v895 = vadd.f32 %v893, %v894
        %v896 = vrot.slane %v868, 4
        %v897 = vadd.f32 %v868, %v896
        %v898 = vrot.slane %v897, 2
        %v899 = vadd.f32 %v897, %v898
        %v900 = vrot.slane %v899, 1
        %v901 = vadd.f32 %v899, %v900
        %v902 = vrot.slane %v869, 4
        %v903 = vadd.f32 %v869, %v902
        %v904 = vrot.slane %v903, 2
        %v905 = vadd.f32 %v903, %v904
        %v906 = vrot.slane %v905, 1
        %v907 = vadd.f32 %v905, %v906
        %v908 = vrot.slane %v870, 4
        %v909 = vadd.f32 %v870, %v908
        %v910 = vrot.slane %v909, 2
        %v911 = vadd.f32 %v909, %v910
        %v912 = vrot.slane %v911, 1
        %v913 = vadd.f32 %v911, %v912
        %v914 = vrot.slane %v871, 4
        %v915 = vadd.f32 %v871, %v914
        %v916 = vrot.slane %v915, 2
        %v917 = vadd.f32 %v915, %v916
        %v918 = vrot.slane %v917, 1
        %v919 = vadd.f32 %v917, %v918
        %vm928 = vcmask 1041409
        %v929 = vsel %vm928, %v883, %v877
        %vm930 = vcmask 1042434
        %v931 = vsel %vm930, %v889, %v929
        %vm932 = vcmask 1043459
        %v933 = vsel %vm932, %v895, %v931
        %vm934 = vcmask 1044484
        %v935 = vsel %vm934, %v901, %v933
        %vm936 = vcmask 1045509
        %v937 = vsel %vm936, %v907, %v935
        %vm938 = vcmask 1046534
        %v939 = vsel %vm938, %v913, %v937
        %vm940 = vcmask 1047559
        %v941 = vsel %vm940, %v919, %v939
        %v943 = vadd.f32 %v806, %v941
        %944 = vst [vmem:[#allocation2] sm:$0xff] %v943
        %p945 = scmp.eq.s32.totalorder %s24, 1
        // Predicated region
        $region49: #{tpu_custom_call.1} parent=31 // pred_check
          %p946 = pneg %p945
        $region50: #{tpu_custom_call.1} parent=31 // pred_check_branch
          %948 = sbr.rel (%p946) target = $region52
        $region51: #{tpu_custom_call.1} parent=31 // pred_region
          %v949 = vld [vmem:[#allocation2] sm:$0xff]
          %950 = vst [vmem:[#allocation9] sm:$0xff] %v949
        $region52: #{tpu_custom_call.1} parent=31 // pred_fallthru
          _
        // Predicated region
        $region53: #{tpu_custom_call.1} parent=31 // pred_check
          %p951 = pneg %p129
        $region54: #{tpu_custom_call.1} parent=31 // pred_check_branch
          %953 = sbr.rel (%p951) target = $region56
        $region55: #{tpu_custom_call.1} parent=31 // pred_region
          %s955 = ssub.s32 128, 128
          %956 = vsyncadd [#allocation5], %s955
          %s957 = smul.addr %s23, 128
          %s958 = scalar_lea.hbm %s3, %s957
          %s960 = sshll.u32 [#allocation9], 4
          %s961 = int_to_ptr.vmem [resolvable:$true] %s960
          %963 = dma.vmem_to_hbm [thread:$0]  %s961, 128, %s958, [#allocation5]
        $region56: #{tpu_custom_call.1} parent=31 // pred_fallthru
          _
        // Predicated region
        $region57: #{tpu_custom_call.1} parent=31 // pred_check
          %p964 = pneg %p129
        $region58: #{tpu_custom_call.1} parent=31 // pred_check_branch
          %966 = sbr.rel (%p964) target = $region60
        $region59: #{tpu_custom_call.1} parent=31 // pred_region
          %967 = dma.done [#allocation5], 128
        $region60: #{tpu_custom_call.1} parent=31 // pred_fallthru
          _
      $region32: #{tpu_custom_call.1} parent=5 // pred_fallthru
        _
      %p968 = scmp.le.s32.totalorder 2, %s14
      // Predicated region
      $region61: #{tpu_custom_call.1} parent=5 // pred_check
        %p969 = pneg %p968
      $region62: #{tpu_custom_call.1} parent=5 // pred_check_branch
        %971 = sbr.rel (%p969) target = $region64
      $region63: #{tpu_custom_call.1} parent=5 // pred_region
        %s972 = ssub.s32 %s14, 2
      $region64: #{tpu_custom_call.1} parent=5 // pred_fallthru
        _
    $region6: #{tpu_custom_call.1} parent=1 // loop_footer
      %s18 = sadd.s32 1, %s14
    $region7: #{tpu_custom_call.1} parent=1 // loop_footer_branch
      %13 = sbr.rel target = $region3
    $region8: #{tpu_custom_call.1} parent=1 // loop_exit
      _
    %973 = vsyncpa [#allocation4], 1
    %s974 = scalar_lea.sflag [#allocation4], 1
    %975 = vsyncpa %s974, 1
    %976 = vsyncpa [#allocation7], 1
    %s977 = scalar_lea.sflag [#allocation7], 1
    %978 = vsyncpa %s977, 1
    %979 = vsyncpa [#allocation5], 1
    %s980 = scalar_lea.sflag [#allocation5], 1
    %981 = vsyncpa %s980, 1

</llo_original>
